<compile_context>
chip_gen: v7x
topology: tpu7x:2x2x1
jax: 0.10.0
libtpu: 0.0.40
codegen_flags: <defaults>
</compile_context>

<pallas_src>
import jax
import jax.numpy as jnp
from jax.experimental import pallas as pl
from jax.experimental.pallas import tpu as pltpu


def mlp_zq_kernel(x_ref, wt_ref, b_ref, o_ref):
    # Linear: x @ W^T + b   (MXU matmul, f32 accumulate)
    z = jnp.dot(x_ref[...], wt_ref[...], preferred_element_type=jnp.float32)
    z = z + b_ref[...]                                  # (tm, 2) + (1, 2) broadcast
    # LeakyReLU (PyTorch default negative_slope = 0.01)
    z = jnp.where(z >= 0, z, 0.01 * z)
    # Softmax over dim=1 (last dim), numerically stable; exact division to keep
    # bitwise-close agreement with the reference (kernel is mem-bound anyway).
    m = jnp.max(z, axis=-1, keepdims=True)
    e = jnp.exp(z - m)
    o_ref[...] = (e / jnp.sum(e, axis=-1, keepdims=True)).astype(o_ref.dtype)


def mlp_zq_forward(x, weight, bias, *, tm=8192):
    """x: (N, n_mlp) f32; weight: (2, n_mlp) (PyTorch Linear layout); bias: (2,).

    tm is the row tile (rows of x processed per grid step). Default 8192 rows
    (~1 MiB f32 x-tile) targets the HBM roofline on v5e/v6e; sweep up to
    16K-32K on v7x (3.2 TB/s HBM) while keeping >= 2 grid steps for its 2 TCs.
    """
    N, n_mlp = x.shape

    # Sublane-align the tile and don't make it larger than the (padded) problem.
    n_pad8 = ((N + 7) // 8) * 8
    tm_eff = max(8, min((tm // 8) * 8, n_pad8))

    # Pad N up to a multiple of tm_eff (padded rows compute harmless finite
    # softmax values and are sliced off below).
    n_steps = pl.cdiv(N, tm_eff)
    N_pad = n_steps * tm_eff
    if N_pad != N:
        x = jnp.pad(x, ((0, N_pad - N), (0, 0)))

    wt = weight.T                      # (n_mlp, 2) — glue transpose in plain JAX
    b2 = bias.reshape(1, 2)            # 2-D for TPU-friendly broadcast

    out = pl.pallas_call(
        mlp_zq_kernel,
        out_shape=jax.ShapeDtypeStruct((N_pad, 2), jnp.float32),
        grid_spec=pl.GridSpec(
            grid=(n_steps,),
            in_specs=[
                pl.BlockSpec((tm_eff, n_mlp), lambda i: (i, 0)),   # row tile of x
                pl.BlockSpec((n_mlp, 2), lambda i: (0, 0)),        # full weight (resident)
                pl.BlockSpec((1, 2), lambda i: (0, 0)),            # bias
            ],
            out_specs=pl.BlockSpec((tm_eff, 2), lambda i: (i, 0)),
        ),
        compiler_params=pltpu.CompilerParams(
            dimension_semantics=("parallel",)
        ),
    )(x, wt, b2)

    return out[:N]


def mlp_zq_reference(x, weight, bias):
    z = x @ weight.T + bias
    z = jnp.where(z >= 0, z, 0.01 * z)
    return jax.nn.softmax(z, axis=1)


if __name__ == "__main__":
    key = jax.random.PRNGKey(0)
    k_x, k_w, k_b = jax.random.split(key, 3)

    # Small shapes consistent with Linear(n_mlp, 2)
    N, n_mlp = 8, 32
    x = jax.random.normal(k_x, (N, n_mlp), dtype=jnp.float32)
    weight = jax.random.normal(k_w, (2, n_mlp), dtype=jnp.float32) * (1.0 / jnp.sqrt(n_mlp))
    bias = jax.random.normal(k_b, (2,), dtype=jnp.float32) * 0.1

    out = mlp_zq_forward(x, weight, bias)
    out = jax.block_until_ready(out)
    ref = mlp_zq_reference(x, weight, bias)
    assert out.shape == (N, 2)
    assert jnp.allclose(out, ref, atol=1e-5, rtol=1e-5), "mismatch vs reference (small)"
    assert jnp.allclose(jnp.sum(out, axis=1), 1.0, atol=1e-5), "softmax rows must sum to 1"

    # Exercise the padding + multi-step-grid path (N not a multiple of tm).
    N2 = 1003
    x2 = jax.random.normal(k_x, (N2, n_mlp), dtype=jnp.float32)
    out2 = mlp_zq_forward(x2, weight, bias, tm=128)
    out2 = jax.block_until_ready(out2)
    ref2 = mlp_zq_reference(x2, weight, bias)
    assert out2.shape == (N2, 2)
    assert jnp.allclose(out2, ref2, atol=1e-5, rtol=1e-5), "mismatch vs reference (padded)"
    assert jnp.allclose(jnp.sum(out2, axis=1), 1.0, atol=1e-5), "softmax rows must sum to 1"

    print("KERNEL_OK")
</pallas_src>

<mosaic_0001>
module attributes {stable_mosaic.version = 11 : i64} {
  func.func @mlp_zq_kernel(%arg0: i32, %arg1: memref<8x32xf32, #tpu.memory_space<vmem>>, %arg2: memref<32x2xf32, #tpu.memory_space<vmem>>, %arg3: memref<1x2xf32, #tpu.memory_space<vmem>>, %arg4: memref<8x2xf32, #tpu.memory_space<vmem>>) attributes {dimension_semantics = [#tpu.dimension_semantics<parallel>], iteration_bounds = array<i64: 1>, scalar_prefetch = 0 : i64, scratch_operands = 0 : i64, tpu.core_type = #tpu.core_type<tc>, window_params = [{transform_indices = @transform_0, window_bounds = array<i64: 8, 32>}, {pipeline_mode = #tpu.pipeline_mode<synchronous>, transform_indices = @transform_1, window_bounds = array<i64: 32, 2>}, {pipeline_mode = #tpu.pipeline_mode<synchronous>, transform_indices = @transform_2, window_bounds = array<i64: 1, 2>}, {transform_indices = @transform_3, window_bounds = array<i64: 8, 2>}]} {
    %c0 = arith.constant 0 : index
    %c0_0 = arith.constant 0 : index
    %0 = vector.load %arg1[%c0, %c0_0] : memref<8x32xf32, #tpu.memory_space<vmem>>, vector<8x32xf32>
    %c0_1 = arith.constant 0 : index
    %c0_2 = arith.constant 0 : index
    %1 = vector.load %arg2[%c0_1, %c0_2] : memref<32x2xf32, #tpu.memory_space<vmem>>, vector<32x2xf32>
    %cst = arith.constant dense<0.000000e+00> : vector<8x2xf32>
    %2 = tpu.matmul %0, %1, %cst {dimension_numbers = #tpu.dot_dimension_numbers<[1], [0], [0], [1], [0, 0, 1, 1], [], []>} : vector<8x32xf32>, vector<32x2xf32>, vector<8x2xf32> -> vector<8x2xf32>
    %c0_3 = arith.constant 0 : index
    %c0_4 = arith.constant 0 : index
    %3 = vector.load %arg3[%c0_3, %c0_4] : memref<1x2xf32, #tpu.memory_space<vmem>>, vector<1x2xf32>
    %4 = vector.broadcast %3 : vector<1x2xf32> to vector<8x2xf32>
    %5 = arith.addf %2, %4 : vector<8x2xf32>
    %cst_5 = arith.constant 0.000000e+00 : f32
    %6 = vector.broadcast %cst_5 : f32 to vector<8x2xf32>
    %7 = arith.cmpf oge, %5, %6 : vector<8x2xf32>
    %cst_6 = arith.constant 0.00999999977 : f32
    %8 = vector.broadcast %cst_6 : f32 to vector<8x2xf32>
    %9 = arith.mulf %8, %5 : vector<8x2xf32>
    %10 = arith.select %7, %5, %9 : vector<8x2xi1>, vector<8x2xf32>
    %cst_7 = arith.constant dense<0xFF800000> : vector<8xf32>
    %11 = vector.multi_reduction <maximumf>, %10, %cst_7 [1] : vector<8x2xf32> to vector<8xf32>
    %12 = vector.shape_cast %11 : vector<8xf32> to vector<8x1xf32>
    %13 = vector.broadcast %12 : vector<8x1xf32> to vector<8x2xf32>
    %14 = arith.subf %10, %13 : vector<8x2xf32>
    %15 = math.exp %14 : vector<8x2xf32>
    %cst_8 = arith.constant dense<0.000000e+00> : vector<8xf32>
    %16 = vector.multi_reduction <add>, %15, %cst_8 [1] : vector<8x2xf32> to vector<8xf32>
    %17 = vector.shape_cast %16 : vector<8xf32> to vector<8x1xf32>
    %18 = vector.broadcast %17 : vector<8x1xf32> to vector<8x2xf32>
    %19 = arith.divf %15, %18 : vector<8x2xf32>
    %c0_9 = arith.constant 0 : index
    %c0_10 = arith.constant 0 : index
    %20 = vector.load %arg4[%c0_9, %c0_10] : memref<8x2xf32, #tpu.memory_space<vmem>>, vector<8x2xf32>
    tpu.vector_store %arg4[%c0_9, %c0_10], %19 {strides = array<i32>} : memref<8x2xf32, #tpu.memory_space<vmem>>, vector<8x2xf32>,
    return
  }
  func.func @transform_0(%arg0: i32) -> (i32, i32) {
    %c0_i32 = arith.constant 0 : i32
    %c0_i32_0 = arith.constant 0 : i32
    return %arg0, %c0_i32 : i32, i32
  }
  func.func @transform_1(%arg0: i32) -> (i32, i32) {
    %c0_i32 = arith.constant 0 : i32
    %c0_i32_0 = arith.constant 0 : i32
    %c0_i32_1 = arith.constant 0 : i32
    return %c0_i32, %c0_i32_0 : i32, i32
  }
  func.func @transform_2(%arg0: i32) -> (i32, i32) {
    %c0_i32 = arith.constant 0 : i32
    %c0_i32_0 = arith.constant 0 : i32
    %c0_i32_1 = arith.constant 0 : i32
    return %c0_i32, %c0_i32_0 : i32, i32
  }
  func.func @transform_3(%arg0: i32) -> (i32, i32) {
    %c0_i32 = arith.constant 0 : i32
    %c0_i32_0 = arith.constant 0 : i32
    return %arg0, %c0_i32 : i32, i32
  }
}

</mosaic_0001>

<llo_original>
// kernel: tpu_custom_call.1
$region0: #{tpu_custom_call.1}
  #allocation0 [shape = 'u32[]', space=smem, size = 0x4, offset = 0x4, fixed_abs, tag = 'smem constant byte address 0x4 - core index']
  #allocation1 [shape = 'u32[144,128]{1,0:T(1,128)}', space=vmem, size = 0x12000, scoped, tag = 'internal scratch']
  %s0 = inlined_call_operand.vmem [shape: f32[8,32], index: 0, kind: input, shape index: {}]
  %s1 = inlined_call_operand.vmem [shape: f32[32,2], index: 1, kind: input, shape index: {}]
  %s2 = inlined_call_operand.vmem [shape: f32[1,2], index: 2, kind: input, shape index: {}]
  %s3 = inlined_call_operand.vmem [shape: f32[8,2], index: 3, kind: output, shape index: {}]
  %s4 = sld [smem:[#allocation0]]
  $region22: #{tpu_custom_call.1} parent=0
    _
  %s6 = ssub.s32 1, %s4
  %s7 = scalar_select 0, %s6, %s4
  // Predicated region
  $region2: #{tpu_custom_call.1} parent=0 // pred_check
    _
  $region3: #{tpu_custom_call.1} parent=0 // pred_check_branch
    %9 = sbr.rel (0) target = $region5
  $region4: #{tpu_custom_call.1} parent=0 // pred_region
    _
  $region5: #{tpu_custom_call.1} parent=0 // pred_fallthru
    _
  // Predicated region
  $region6: #{tpu_custom_call.1} parent=0 // pred_check
    _
  $region7: #{tpu_custom_call.1} parent=0 // pred_check_branch
    %11 = sbr.rel (0) target = $region9
  $region8: #{tpu_custom_call.1} parent=0 // pred_region
    _
  $region9: #{tpu_custom_call.1} parent=0 // pred_fallthru
    _
  // Predicated region
  $region10: #{tpu_custom_call.1} parent=0 // pred_check
    _
  $region11: #{tpu_custom_call.1} parent=0 // pred_check_branch
    %13 = sbr.rel (0) target = $region13
  $region12: #{tpu_custom_call.1} parent=0 // pred_region
    _
  $region13: #{tpu_custom_call.1} parent=0 // pred_fallthru
    _
  %v14 = vld [vmem:[%s0] sm:$0xff]
  %v15 = vld [vmem:[%s1] sm:$0xff]
  %v16 = vld [vmem:[%s1 + $0x8] sm:$0xff]
  %v17 = vld [vmem:[%s1 + $0x10] sm:$0xff]
  %v18 = vld [vmem:[%s1 + $0x18] sm:$0xff]
  %v19 = vld [vmem:[%s2] sm:$0x1]
  %v21 = vlaneseq
  %v22 = vshrl.u32 %v21, 7
  %v23 = vsub.s32 0, %v22
  %v24 = vrot.slane %v19, %v23
  %vm26 = vcmask 261120
  %v28 = vsel %vm26, %v14, 0
  %30 = vmatprep.subr.mxu0 0.0
  %31 = vmatpush1.msra.mxu0 %v15
  %32 = vmatprep.subr.mxu0 0.0
  %33 = vmatpush1.msra.mxu0 %v16
  %34 = vmatprep.subr.mxu0 0.0
  %35 = vmatpush1.msra.mxu0 %v17
  %36 = vmatprep.subr.mxu0 0.0
  %37 = vmatpush1.msra.mxu0 %v18
  %38 = vmatprep.subr.mxu0 0.0
  %39 = vmatpush1.msra.mxu0 0.0
  %40 = vmatprep.subr.mxu0 0.0
  %41 = vmatpush1.msra.mxu0 0.0
  %42 = vmatprep.subr.mxu0 0.0
  %43 = vmatpush1.msra.mxu0 0.0
  %44 = vmatprep.subr.mxu0 0.0
  %45 = vmatpush1.msra.mxu0 0.0
  %46 = vmatprep.subr.mxu0 0.0
  %47 = vmatpush1.msra.mxu0 0.0
  %48 = vmatprep.subr.mxu0 0.0
  %49 = vmatpush1.msra.mxu0 0.0
  %50 = vmatprep.subr.mxu0 0.0
  %51 = vmatpush1.msra.mxu0 0.0
  %52 = vmatprep.subr.mxu0 0.0
  %53 = vmatpush1.msra.mxu0 0.0
  %54 = vmatprep.subr.mxu0 0.0
  %55 = vmatpush1.msra.mxu0 0.0
  %56 = vmatprep.subr.mxu0 0.0
  %57 = vmatpush1.msra.mxu0 0.0
  %58 = vmatprep.subr.mxu0 0.0
  %59 = vmatpush1.msra.mxu0 0.0
  %60 = vmatprep.subr.mxu0 0.0
  %61 = vmatpush1.msra.mxu0 0.0
  %62 = vmatprep.subr.mxu0 0.0
  %63 = vmatpush1.msra.mxu0 0.0
  %64 = vmatprep.subr.mxu0 0.0
  %65 = vmatpush1.msra.mxu0 0.0
  %66 = vmatprep.subr.mxu0 0.0
  %67 = vmatpush1.msra.mxu0 0.0
  %68 = vmatprep.subr.mxu0 0.0
  %69 = vmatpush1.msra.mxu0 0.0
  %70 = vmatprep.subr.mxu0 0.0
  %71 = vmatpush1.msra.mxu0 0.0
  %72 = vmatprep.subr.mxu0 0.0
  %73 = vmatpush1.msra.mxu0 0.0
  %74 = vmatprep.subr.mxu0 0.0
  %75 = vmatpush1.msra.mxu0 0.0
  %76 = vmatprep.subr.mxu0 0.0
  %77 = vmatpush1.msra.mxu0 0.0
  %78 = vmatprep.subr.mxu0 0.0
  %79 = vmatpush1.msra.mxu0 0.0
  %80 = vmatprep.subr.mxu0 0.0
  %81 = vmatpush1.msra.mxu0 0.0
  %82 = vmatprep.subr.mxu0 0.0
  %83 = vmatpush1.msra.mxu0 0.0
  %84 = vmatprep.subr.mxu0 0.0
  %85 = vmatpush1.msra.mxu0 0.0
  %86 = vmatprep.subr.mxu0 0.0
  %87 = vmatpush1.msra.mxu0 0.0
  %88 = vmatprep.subr.mxu0 0.0
  %89 = vmatpush1.msra.mxu0 0.0
  %90 = vmatprep.subr.mxu0 0.0
  %91 = vmatpush1.msra.mxu0 0.0
  %92 = vmatprep.subr.mxu0 0.0
  %93 = vmatpush1.msra.mxu0 0.0
  %94 = vmatprep.mubr.f32.mxu0 0.0
  %95 = vmatmul.mubr.f32.gmra.mrb[0].mxu0 %v28
  %v96 = vpop.f32.mrb[0].mxu0
  %v97 = vadd.f32 %v24, %v96
  %v98 = vpop.f32.mrb[0].mxu0
  %99 = vdwg.mxu0
  %vm100 = vcmp.ge.f32.partialorder %v97, 0.0
  %v101 = vmul.f32 %v97, 0.01
  %v102 = vsel %vm100, %v97, %v101
  %vm103 = vcmask 15360
  %v104 = vsel %vm103, %v102, -inf
  %105 = vmax.xlane.f32.xlu0 %v104
  %v106 = vpop.xlane.xlu0 %105
  %v107 = vsub.f32 %v102, %v106
  %v108 = vmul.f32 %v107, 1.442695
  %v109 = vpow.pop %v108
  %v110 = vsel %vm103, %v109, 0.0
  %111 = vadd.xlane.f32.xlu0 %v110
  %v112 = vpop.xlane.xlu0 %111
  %v113 = vrcp.pop %v112
  %v114 = vmul.f32 %v109, %v113
  %115 = vst.msk [vmem:[%s3] sm:$0xff] %vm103, %v114
  // Predicated region
  $region14: #{tpu_custom_call.1} parent=0 // pred_check
    _
  $region15: #{tpu_custom_call.1} parent=0 // pred_check_branch
    %117 = sbr.rel (0) target = $region17
  $region16: #{tpu_custom_call.1} parent=0 // pred_region
    _
  $region17: #{tpu_custom_call.1} parent=0 // pred_fallthru
    _
  // Predicated region
  $region18: #{tpu_custom_call.1} parent=0 // pred_check
    _
  $region19: #{tpu_custom_call.1} parent=0 // pred_check_branch
    %119 = sbr.rel (0) target = $region21
  $region20: #{tpu_custom_call.1} parent=0 // pred_region
    _
  $region21: #{tpu_custom_call.1} parent=0 // pred_fallthru
    _

</llo_original>
